<compile_context>
chip_gen: v6e
topology: v6e:2x2x1
jax: 0.10.0
libtpu: 0.0.40
codegen_flags: <defaults>
</compile_context>

<pallas_src>
import functools

import jax
import jax.numpy as jnp
import numpy as np
from jax.experimental import pallas as pl
from jax.experimental.pallas import tpu as pltpu

C_IN, C_MID, C_OUT = 3, 64, 5
K = 3                       # encoder conv kernel size
KF = K * K * C_IN           # 27 im2col features per conv output pixel
RPT = 8                     # decoder rows per ConvTranspose tap (sublane-aligned group)


def _roll_lanes(v, shift):
    """Circular roll along the last (lane) axis, jnp.roll semantics."""
    size = v.shape[-1]
    shift = shift % size
    if shift == 0:
        return v
    return pltpu.roll(v, shift, axis=v.ndim - 1)


def rgbtox_kernel(x_ref, w1_ref, w2_ref, msk_ref, o_ref, pat_ref, *, w2p):
    """Fused Conv3x3+ReLU+MaxPool2x2 -> ConvTranspose2x2(s2)+Sigmoid, one image.

    Flat lane index l = r*(W+2) + s addresses the zero-padded image; conv output
    pixel (y, x) lives at lane q = y*(W+2)+x, pooled pixel (oi, oj) at
    q = 2*oi*(W+2)+2*oj, and final output pixel (Y, X) at l = Y*(W+2)+X.

    x_ref  : (1, 3, P)  bf16  zero-padded image, spatially flattened, P % 128 == 0
    w1_ref : (64, 28)   bf16  conv weight (f = (kh*3+kw)*3+cin) | folded b1 column
    w2_ref : (32, 65)   bf16  conv-transpose weight, rows tap*8+o (3 zero rows/tap) | b2 col
    msk_ref: (2, P)     f32   [row-parity-even, col-parity-even] masks (1.0 / 0.0)
    o_ref  : (1, 5, P)  bf16  decoded output in the flat padded-width pixel layout
    pat_ref: (28, P)    f32   scratch: im2col matrix + constant ones (bias) row
    """
    p = x_ref.shape[-1]
    x = x_ref[0].astype(jnp.float32)                               # (3, P)

    # --- in-kernel im2col: 9 lane shifts build the 27 conv features ---
    for kh in range(K):
        for kw in range(K):
            s = kh * w2p + kw
            pat_ref[pl.ds(3 * (kh * K + kw), 3), :] = _roll_lanes(x, -s)
    pat_ref[pl.ds(KF, 1), :] = jnp.ones((1, p), jnp.float32)       # folded b1 row

    # --- encoder: Conv3x3 (+bias) as a single bf16 MXU matmul ---
    patches = pat_ref[...].astype(jnp.bfloat16)                    # (28, P)
    c = jnp.dot(w1_ref[...], patches,
                preferred_element_type=jnp.float32)                # (64, P)

    # --- 2x2 stride-2 max-pool via two lane-shifted maxes, then ReLU ---
    m = jnp.maximum(c, _roll_lanes(c, -1))
    m = jnp.maximum(m, _roll_lanes(m, -w2p))
    enc = jnp.maximum(m, 0.0).astype(jnp.bfloat16)                 # valid at even (y, x)

    # --- decoder: 4 ConvTranspose taps x 5 channels (+bias) in one matmul ---
    enc_aug = jnp.concatenate([enc, jnp.ones((1, p), jnp.bfloat16)], axis=0)  # (65, P)
    y = jnp.dot(w2_ref[...], enc_aug,
                preferred_element_type=jnp.float32)                # (32, P)

    # --- sigmoid: exp and approx reciprocal both run on the (idle) EUP slot ---
    sig = pl.reciprocal(1.0 + jnp.exp(-y), approx=True)            # (32, P)

    # --- stride-2 upsample interleave: pick the tap by output-pixel parity ---
    row_even = msk_ref[0:1, :] > 0.5
    col_even = msk_ref[1:2, :] > 0.5
    s00 = sig[0 * RPT:0 * RPT + C_OUT]
    s01 = _roll_lanes(sig[1 * RPT:1 * RPT + C_OUT], 1)
    s10 = _roll_lanes(sig[2 * RPT:2 * RPT + C_OUT], w2p)
    s11 = _roll_lanes(sig[3 * RPT:3 * RPT + C_OUT], w2p + 1)
    out = jnp.where(row_even, jnp.where(col_even, s00, s01),
                    jnp.where(col_even, s10, s11))
    o_ref[0] = out.astype(o_ref.dtype)


def rgbtox_forward(x_nchw, w1, b1, w2, b2):
    n, cin, h, w = x_nchw.shape
    assert cin == C_IN and h % 2 == 0 and w % 2 == 0, (n, cin, h, w)
    w2p = w + 2
    p_in = (h + 2) * w2p
    p_pad = ((p_in + 127) // 128) * 128        # lane-dense, full-width stores

    # raw zero-padded image: (N, 3, (H+2)*(W+2)) bf16, zero-padded to p_pad lanes
    xp = jnp.pad(x_nchw, ((0, 0), (0, 0), (1, 1), (1, 1)))
    xflat = jnp.pad(xp.reshape(n, C_IN, p_in),
                    ((0, 0), (0, 0), (0, p_pad - p_in))).astype(jnp.bfloat16)

    # Conv2d weight (out,in,kh,kw) -> (out, (kh*3+kw)*3+cin) with b1 folded in.
    w1t = jnp.transpose(w1, (0, 2, 3, 1)).reshape(C_MID, KF)
    w1a = jnp.concatenate([w1t, b1.reshape(C_MID, 1)], axis=1).astype(jnp.bfloat16)

    # ConvTranspose2d weight (in,out,kh,kw) -> rows tap*8+o (sublane-aligned tap
    # groups, 3 zero rows per tap), columns = 64 inputs + folded b2 column.
    w2t = jnp.transpose(w2, (2, 3, 1, 0)).reshape(4, C_OUT, C_MID)     # (4,5,64)
    b2c = jnp.tile(b2, 4).reshape(4, C_OUT, 1)                         # (4,5,1)
    w2g = jnp.concatenate([w2t, b2c], axis=2)                          # (4,5,65)
    w2a = jnp.zeros((4, RPT, C_MID + 1), jnp.float32).at[:, :C_OUT].set(w2g)
    w2a = w2a.reshape(4 * RPT, C_MID + 1).astype(jnp.bfloat16)         # (32,65)

    # output-pixel parity masks in the flat padded-width lane space
    lane = np.arange(p_pad)
    masks = jnp.asarray(np.stack([(lane // w2p) % 2 == 0, lane % 2 == 0]),
                        dtype=jnp.float32)                             # (2, p_pad)

    flops = 2 * n * p_pad * (C_MID * (KF + 1) + 4 * RPT * (C_MID + 1))
    bytes_accessed = ((xflat.size + w1a.size + w2a.size) * 2
                      + masks.size * 4 + n * C_OUT * p_pad * 2)

    out_flat = pl.pallas_call(
        functools.partial(rgbtox_kernel, w2p=w2p),
        out_shape=jax.ShapeDtypeStruct((n, C_OUT, p_pad), jnp.bfloat16),
        grid_spec=pltpu.PrefetchScalarGridSpec(
            num_scalar_prefetch=0,
            grid=(n,),
            in_specs=[
                pl.BlockSpec((1, C_IN, p_pad), lambda i: (i, 0, 0)),
                pl.BlockSpec((C_MID, KF + 1), lambda i: (0, 0)),
                pl.BlockSpec((4 * RPT, C_MID + 1), lambda i: (0, 0)),
                pl.BlockSpec((2, p_pad), lambda i: (0, 0)),
            ],
            out_specs=pl.BlockSpec((1, C_OUT, p_pad), lambda i: (i, 0, 0)),
            scratch_shapes=[pltpu.VMEM((KF + 1, p_pad), jnp.float32)],
        ),
        compiler_params=pltpu.CompilerParams(
            dimension_semantics=("parallel",)),
        cost_estimate=pl.CostEstimate(
            flops=flops,
            transcendentals=n * 4 * RPT * p_pad,
            bytes_accessed=bytes_accessed),
    )(xflat, w1a, w2a, masks)

    # only remaining XLA epilogue: drop the 2 width-padding columns per row
    out = out_flat[:, :, :h * w2p].reshape(n, C_OUT, h, w2p)[..., :w]
    return out.astype(jnp.float32)


def rgbtox_reference(x_nchw, w1, b1, w2, b2):
    """Plain-JAX f32 reference of the PyTorch forward pass (NCHW)."""
    hp = jax.lax.Precision.HIGHEST
    y = jax.lax.conv_general_dilated(
        x_nchw, w1, window_strides=(1, 1), padding=((1, 1), (1, 1)),
        dimension_numbers=("NCHW", "OIHW", "NCHW"), precision=hp)
    y = jnp.maximum(y + b1[None, :, None, None], 0.0)
    y = jax.lax.reduce_window(y, -jnp.inf, jax.lax.max,
                              (1, 1, 2, 2), (1, 1, 2, 2), "VALID")
    # ConvTranspose2d(k=2, s=2): out[n,o,2i+d,2j+k] = sum_c y[n,c,i,j]*w2[c,o,d,k] + b2[o]
    z = jnp.einsum("nchw,codk->nohwdk", y, w2, precision=hp)
    N, O, Hh, Ww = z.shape[:4]
    z = z.transpose(0, 1, 2, 4, 3, 5).reshape(N, O, Hh * 2, Ww * 2)
    z = z + b2[None, :, None, None]
    return jax.nn.sigmoid(z)


if __name__ == "__main__":
    key = jax.random.PRNGKey(0)
    kx, kw1, kb1, kw2, kb2 = jax.random.split(key, 5)

    # input consistent with the module's 3-channel RGB expectation
    x = jax.random.normal(kx, (2, 3, 16, 16), jnp.float32)

    # deterministic synthetic parameters (shapes from the PyTorch module __init__)
    w1 = 0.1 * jax.random.normal(kw1, (C_MID, C_IN, 3, 3), jnp.float32)   # Conv2d
    b1 = 0.1 * jax.random.normal(kb1, (C_MID,), jnp.float32)
    w2 = 0.1 * jax.random.normal(kw2, (C_MID, C_OUT, 2, 2), jnp.float32)  # ConvTranspose2d
    b2 = 0.1 * jax.random.normal(kb2, (C_OUT,), jnp.float32)

    fwd = jax.jit(rgbtox_forward)
    out = jax.block_until_ready(fwd(x, w1, b1, w2, b2))

    ref = rgbtox_reference(x, w1, b1, w2, b2)
    assert out.shape == (2, 5, 16, 16), out.shape
    err = float(jnp.max(jnp.abs(out - ref)))
    assert err < 2e-2, err

    print("KERNEL_OK")
</pallas_src>

<mosaic_0001>
module attributes {stable_mosaic.version = 11 : i64} {
  func.func @rgbtox_kernel(%arg0: i32, %arg1: memref<1x3x384xbf16, #tpu.memory_space<vmem>>, %arg2: memref<64x28xbf16, #tpu.memory_space<vmem>>, %arg3: memref<32x65xbf16, #tpu.memory_space<vmem>>, %arg4: memref<2x384xf32, #tpu.memory_space<vmem>>, %arg5: memref<1x5x384xbf16, #tpu.memory_space<vmem>>, %arg6: memref<28x384xf32, #tpu.memory_space<vmem>>) attributes {dimension_semantics = [#tpu.dimension_semantics<parallel>], iteration_bounds = array<i64: 2>, scalar_prefetch = 0 : i64, scratch_operands = 1 : i64, tpu.core_type = #tpu.core_type<tc>, window_params = [{transform_indices = @transform_0, window_bounds = array<i64: 1, 3, 384>}, {pipeline_mode = #tpu.pipeline_mode<synchronous>, transform_indices = @transform_1, window_bounds = array<i64: 64, 28>}, {pipeline_mode = #tpu.pipeline_mode<synchronous>, transform_indices = @transform_2, window_bounds = array<i64: 32, 65>}, {pipeline_mode = #tpu.pipeline_mode<synchronous>, transform_indices = @transform_3, window_bounds = array<i64: 2, 384>}, {transform_indices = @transform_4, window_bounds = array<i64: 1, 5, 384>}]} {
    %c0 = arith.constant 0 : index
    %c0_0 = arith.constant 0 : index
    %c0_1 = arith.constant 0 : index
    %0 = vector.load %arg1[%c0, %c0_0, %c0_1] : memref<1x3x384xbf16, #tpu.memory_space<vmem>>, vector<1x3x384xbf16>
    %1 = vector.shape_cast %0 : vector<1x3x384xbf16> to vector<3x384xbf16>
    %2 = arith.extf %1 : vector<3x384xbf16> to vector<3x384xf32>
    %c0_2 = arith.constant 0 : index
    %c0_3 = arith.constant 0 : index
    %3 = vector.load %arg6[%c0_2, %c0_3] : memref<28x384xf32, #tpu.memory_space<vmem>>, vector<3x384xf32>
    tpu.vector_store %arg6[%c0_2, %c0_3], %2 {strides = array<i32>} : memref<28x384xf32, #tpu.memory_space<vmem>>, vector<3x384xf32>,
    %c383_i32 = arith.constant 383 : i32
    %4 = tpu.dynamic_rotate %2 by %c383_i32 dim 1 : vector<3x384xf32>, i32 -> vector<3x384xf32>
    %c3 = arith.constant 3 : index
    %c0_4 = arith.constant 0 : index
    %5 = vector.load %arg6[%c3, %c0_4] : memref<28x384xf32, #tpu.memory_space<vmem>>, vector<3x384xf32>
    tpu.vector_store %arg6[%c3, %c0_4], %4 {strides = array<i32>} : memref<28x384xf32, #tpu.memory_space<vmem>>, vector<3x384xf32>,
    %c382_i32 = arith.constant 382 : i32
    %6 = tpu.dynamic_rotate %2 by %c382_i32 dim 1 : vector<3x384xf32>, i32 -> vector<3x384xf32>
    %c6 = arith.constant 6 : index
    %c0_5 = arith.constant 0 : index
    %7 = vector.load %arg6[%c6, %c0_5] : memref<28x384xf32, #tpu.memory_space<vmem>>, vector<3x384xf32>
    tpu.vector_store %arg6[%c6, %c0_5], %6 {strides = array<i32>} : memref<28x384xf32, #tpu.memory_space<vmem>>, vector<3x384xf32>,
    %c366_i32 = arith.constant 366 : i32
    %8 = tpu.dynamic_rotate %2 by %c366_i32 dim 1 : vector<3x384xf32>, i32 -> vector<3x384xf32>
    %c9 = arith.constant 9 : index
    %c0_6 = arith.constant 0 : index
    %9 = vector.load %arg6[%c9, %c0_6] : memref<28x384xf32, #tpu.memory_space<vmem>>, vector<3x384xf32>
    tpu.vector_store %arg6[%c9, %c0_6], %8 {strides = array<i32>} : memref<28x384xf32, #tpu.memory_space<vmem>>, vector<3x384xf32>,
    %c365_i32 = arith.constant 365 : i32
    %10 = tpu.dynamic_rotate %2 by %c365_i32 dim 1 : vector<3x384xf32>, i32 -> vector<3x384xf32>
    %c12 = arith.constant 12 : index
    %c0_7 = arith.constant 0 : index
    %11 = vector.load %arg6[%c12, %c0_7] : memref<28x384xf32, #tpu.memory_space<vmem>>, vector<3x384xf32>
    tpu.vector_store %arg6[%c12, %c0_7], %10 {strides = array<i32>} : memref<28x384xf32, #tpu.memory_space<vmem>>, vector<3x384xf32>,
    %c364_i32 = arith.constant 364 : i32
    %12 = tpu.dynamic_rotate %2 by %c364_i32 dim 1 : vector<3x384xf32>, i32 -> vector<3x384xf32>
    %c15 = arith.constant 15 : index
    %c0_8 = arith.constant 0 : index
    %13 = vector.load %arg6[%c15, %c0_8] : memref<28x384xf32, #tpu.memory_space<vmem>>, vector<3x384xf32>
    tpu.vector_store %arg6[%c15, %c0_8], %12 {strides = array<i32>} : memref<28x384xf32, #tpu.memory_space<vmem>>, vector<3x384xf32>,
    %c348_i32 = arith.constant 348 : i32
    %14 = tpu.dynamic_rotate %2 by %c348_i32 dim 1 : vector<3x384xf32>, i32 -> vector<3x384xf32>
    %c18 = arith.constant 18 : index
    %c0_9 = arith.constant 0 : index
    %15 = vector.load %arg6[%c18, %c0_9] : memref<28x384xf32, #tpu.memory_space<vmem>>, vector<3x384xf32>
    tpu.vector_store %arg6[%c18, %c0_9], %14 {strides = array<i32>} : memref<28x384xf32, #tpu.memory_space<vmem>>, vector<3x384xf32>,
    %c347_i32 = arith.constant 347 : i32
    %16 = tpu.dynamic_rotate %2 by %c347_i32 dim 1 : vector<3x384xf32>, i32 -> vector<3x384xf32>
    %c21 = arith.constant 21 : index
    %c0_10 = arith.constant 0 : index
    %17 = vector.load %arg6[%c21, %c0_10] : memref<28x384xf32, #tpu.memory_space<vmem>>, vector<3x384xf32>
    tpu.vector_store %arg6[%c21, %c0_10], %16 {strides = array<i32>} : memref<28x384xf32, #tpu.memory_space<vmem>>, vector<3x384xf32>,
    %c346_i32 = arith.constant 346 : i32
    %18 = tpu.dynamic_rotate %2 by %c346_i32 dim 1 : vector<3x384xf32>, i32 -> vector<3x384xf32>
    %c24 = arith.constant 24 : index
    %c0_11 = arith.constant 0 : index
    %19 = vector.load %arg6[%c24, %c0_11] : memref<28x384xf32, #tpu.memory_space<vmem>>, vector<3x384xf32>
    tpu.vector_store %arg6[%c24, %c0_11], %18 {strides = array<i32>} : memref<28x384xf32, #tpu.memory_space<vmem>>, vector<3x384xf32>,
    %cst = arith.constant 1.000000e+00 : f32
    %20 = vector.broadcast %cst : f32 to vector<1x384xf32>
    %c27 = arith.constant 27 : index
    %c0_12 = arith.constant 0 : index
    %21 = vector.load %arg6[%c27, %c0_12] : memref<28x384xf32, #tpu.memory_space<vmem>>, vector<1x384xf32>
    tpu.vector_store %arg6[%c27, %c0_12], %20 {strides = array<i32>} : memref<28x384xf32, #tpu.memory_space<vmem>>, vector<1x384xf32>,
    %c0_13 = arith.constant 0 : index
    %c0_14 = arith.constant 0 : index
    %22 = vector.load %arg6[%c0_13, %c0_14] : memref<28x384xf32, #tpu.memory_space<vmem>>, vector<28x384xf32>
    %23 = arith.truncf %22 : vector<28x384xf32> to vector<28x384xbf16>
    %c0_15 = arith.constant 0 : index
    %c0_16 = arith.constant 0 : index
    %24 = vector.load %arg2[%c0_15, %c0_16] : memref<64x28xbf16, #tpu.memory_space<vmem>>, vector<64x28xbf16>
    %cst_17 = arith.constant dense<0.000000e+00> : vector<64x384xf32>
    %25 = tpu.matmul %24, %23, %cst_17 {dimension_numbers = #tpu.dot_dimension_numbers<[1], [0], [0], [1], [0, 0, 1, 1], [], []>} : vector<64x28xbf16>, vector<28x384xbf16>, vector<64x384xf32> -> vector<64x384xf32>
    %c383_i32_18 = arith.constant 383 : i32
    %26 = tpu.dynamic_rotate %25 by %c383_i32_18 dim 1 : vector<64x384xf32>, i32 -> vector<64x384xf32>
    %27 = arith.maximumf %25, %26 : vector<64x384xf32>
    %c366_i32_19 = arith.constant 366 : i32
    %28 = tpu.dynamic_rotate %27 by %c366_i32_19 dim 1 : vector<64x384xf32>, i32 -> vector<64x384xf32>
    %29 = arith.maximumf %27, %28 : vector<64x384xf32>
    %cst_20 = arith.constant 0.000000e+00 : f32
    %30 = vector.broadcast %cst_20 : f32 to vector<64x384xf32>
    %31 = arith.maximumf %29, %30 : vector<64x384xf32>
    %32 = arith.truncf %31 : vector<64x384xf32> to vector<64x384xbf16>
    %cst_21 = arith.constant 1.000000e+00 : bf16
    %33 = vector.broadcast %cst_21 : bf16 to vector<1x384xbf16>
    %34 = tpu.concatenate %32, %33 in 0 : vector<64x384xbf16>, vector<1x384xbf16> -> vector<65x384xbf16>
    %c0_22 = arith.constant 0 : index
    %c0_23 = arith.constant 0 : index
    %35 = vector.load %arg3[%c0_22, %c0_23] : memref<32x65xbf16, #tpu.memory_space<vmem>>, vector<32x65xbf16>
    %cst_24 = arith.constant dense<0.000000e+00> : vector<32x384xf32>
    %36 = tpu.matmul %35, %34, %cst_24 {dimension_numbers = #tpu.dot_dimension_numbers<[1], [0], [0], [1], [0, 0, 1, 1], [], []>} : vector<32x65xbf16>, vector<65x384xbf16>, vector<32x384xf32> -> vector<32x384xf32>
    %cst_25 = arith.constant 0.000000e+00 : f32
    %37 = vector.broadcast %cst_25 : f32 to vector<32x384xf32>
    %38 = arith.subf %37, %36 : vector<32x384xf32>
    %39 = math.exp %38 : vector<32x384xf32>
    %cst_26 = arith.constant 1.000000e+00 : f32
    %40 = vector.broadcast %cst_26 : f32 to vector<32x384xf32>
    %41 = arith.addf %40, %39 : vector<32x384xf32>
    %42 = tpu.reciprocal %41 {approx = true} : vector<32x384xf32> -> vector<32x384xf32>
    %c0_27 = arith.constant 0 : index
    %c0_28 = arith.constant 0 : index
    %43 = vector.load %arg4[%c0_27, %c0_28] : memref<2x384xf32, #tpu.memory_space<vmem>>, vector<1x384xf32>
    %cst_29 = arith.constant 5.000000e-01 : f32
    %44 = vector.broadcast %cst_29 : f32 to vector<1x384xf32>
    %45 = arith.cmpf ogt, %43, %44 : vector<1x384xf32>
    %c1 = arith.constant 1 : index
    %c0_30 = arith.constant 0 : index
    %46 = vector.load %arg4[%c1, %c0_30] : memref<2x384xf32, #tpu.memory_space<vmem>>, vector<1x384xf32>
    %cst_31 = arith.constant 5.000000e-01 : f32
    %47 = vector.broadcast %cst_31 : f32 to vector<1x384xf32>
    %48 = arith.cmpf ogt, %46, %47 : vector<1x384xf32>
    %49 = vector.extract_strided_slice %42 {offsets = [0, 0], sizes = [5, 384], strides = [1, 1]} : vector<32x384xf32> to vector<5x384xf32>
    %50 = vector.extract_strided_slice %42 {offsets = [8, 0], sizes = [5, 384], strides = [1, 1]} : vector<32x384xf32> to vector<5x384xf32>
    %c1_i32 = arith.constant 1 : i32
    %51 = tpu.dynamic_rotate %50 by %c1_i32 dim 1 : vector<5x384xf32>, i32 -> vector<5x384xf32>
    %52 = vector.extract_strided_slice %42 {offsets = [16, 0], sizes = [5, 384], strides = [1, 1]} : vector<32x384xf32> to vector<5x384xf32>
    %c18_i32 = arith.constant 18 : i32
    %53 = tpu.dynamic_rotate %52 by %c18_i32 dim 1 : vector<5x384xf32>, i32 -> vector<5x384xf32>
    %54 = vector.extract_strided_slice %42 {offsets = [24, 0], sizes = [5, 384], strides = [1, 1]} : vector<32x384xf32> to vector<5x384xf32>
    %c19_i32 = arith.constant 19 : i32
    %55 = tpu.dynamic_rotate %54 by %c19_i32 dim 1 : vector<5x384xf32>, i32 -> vector<5x384xf32>
    %56 = vector.shape_cast %48 : vector<1x384xi1> to vector<1x384xi1>
    %57 = vector.broadcast %56 : vector<1x384xi1> to vector<5x384xi1>
    %58 = arith.select %57, %49, %51 : vector<5x384xi1>, vector<5x384xf32>
    %59 = vector.shape_cast %48 : vector<1x384xi1> to vector<1x384xi1>
    %60 = vector.broadcast %59 : vector<1x384xi1> to vector<5x384xi1>
    %61 = arith.select %60, %53, %55 : vector<5x384xi1>, vector<5x384xf32>
    %62 = vector.shape_cast %45 : vector<1x384xi1> to vector<1x384xi1>
    %63 = vector.broadcast %62 : vector<1x384xi1> to vector<5x384xi1>
    %64 = arith.select %63, %58, %61 : vector<5x384xi1>, vector<5x384xf32>
    %65 = arith.truncf %64 : vector<5x384xf32> to vector<5x384xbf16>
    %c0_32 = arith.constant 0 : index
    %c0_33 = arith.constant 0 : index
    %c0_34 = arith.constant 0 : index
    %66 = vector.load %arg5[%c0_32, %c0_33, %c0_34] : memref<1x5x384xbf16, #tpu.memory_space<vmem>>, vector<1x5x384xbf16>
    %67 = vector.shape_cast %66 : vector<1x5x384xbf16> to vector<5x384xbf16>
    %68 = vector.shape_cast %65 : vector<5x384xbf16> to vector<1x5x384xbf16>
    tpu.vector_store %arg5[%c0_32, %c0_33, %c0_34], %68 {strides = array<i32>} : memref<1x5x384xbf16, #tpu.memory_space<vmem>>, vector<1x5x384xbf16>,
    return
  }
  func.func @transform_0(%arg0: i32) -> (i32, i32, i32) {
    %c0_i32 = arith.constant 0 : i32
    %c0_i32_0 = arith.constant 0 : i32
    %c0_i32_1 = arith.constant 0 : i32
    return %arg0, %c0_i32, %c0_i32_0 : i32, i32, i32
  }
  func.func @transform_1(%arg0: i32) -> (i32, i32) {
    %c0_i32 = arith.constant 0 : i32
    %c0_i32_0 = arith.constant 0 : i32
    %c0_i32_1 = arith.constant 0 : i32
    return %c0_i32, %c0_i32_0 : i32, i32
  }
  func.func @transform_2(%arg0: i32) -> (i32, i32) {
    %c0_i32 = arith.constant 0 : i32
    %c0_i32_0 = arith.constant 0 : i32
    %c0_i32_1 = arith.constant 0 : i32
    return %c0_i32, %c0_i32_0 : i32, i32
  }
  func.func @transform_3(%arg0: i32) -> (i32, i32) {
    %c0_i32 = arith.constant 0 : i32
    %c0_i32_0 = arith.constant 0 : i32
    %c0_i32_1 = arith.constant 0 : i32
    return %c0_i32, %c0_i32_0 : i32, i32
  }
  func.func @transform_4(%arg0: i32) -> (i32, i32, i32) {
    %c0_i32 = arith.constant 0 : i32
    %c0_i32_0 = arith.constant 0 : i32
    %c0_i32_1 = arith.constant 0 : i32
    return %arg0, %c0_i32, %c0_i32_0 : i32, i32, i32
  }
}

</mosaic_0001>

<llo_original>
// kernel: rgbtox_forward.1
$region0: #{rgbtox_forward.1}
  #allocation0 [shape = 'u32[]', space=smem, size = 0x4, offset = 0x4, fixed_abs, tag = 'smem constant byte address 0x4 - core index']
  #allocation1 [shape = 'u32[144,128]{1,0:T(1,128)}', space=vmem, size = 0x12000, scoped, tag = 'internal scratch']
  #allocation2 [shape = 'f32[28,384]{1,0:T(8,128)}', space=vmem, size = 0xc000, scoped, tag = 'scratch operand']
  %s0 = inlined_call_operand.vmem [shape: bf16[2,3,384], index: 0, kind: input, shape index: {}]
  %s1 = inlined_call_operand.vmem [shape: bf16[64,28], index: 1, kind: input, shape index: {}]
  %s2 = inlined_call_operand.vmem [shape: bf16[32,65], index: 2, kind: input, shape index: {}]
  %s3 = inlined_call_operand.vmem [shape: f32[2,384], index: 3, kind: input, shape index: {}]
  %s4 = inlined_call_operand.vmem [shape: bf16[2,5,384], index: 4, kind: output, shape index: {}]
  %s5 = sld [smem:[#allocation0]]
  $region49: #{rgbtox_forward.1} parent=0
    _
  %s7 = ssub.s32 1, %s5
  %s8 = scalar_select 0, %s7, %s5
  loop: start=0, step=1, limit=4
  $region2: #{rgbtox_forward.1} parent=0 // loop_pre_header
    _
  $region3: #{rgbtox_forward.1} parent=0 // loop_header
    %s10 = sphi 0, %s14
    %p11 = scmp.ge.s32.totalorder %s10, 4
    %s20 = sphi 0, %s22
    %s23 = sphi 0, %s20
    %s24 = sphi 0, %s23
    %s40 = sphi 0, %s24
    %s44 = sphi 0, %s44
    %s46 = sphi 0, %s44
    %s47 = sphi 0, %s46
    %s61 = sphi 0, %s47
    %s65 = sphi 0, %s65
    %s67 = sphi 0, %s65
    %s68 = sphi 0, %s67
    %s82 = sphi 0, %s68
    %s86 = sphi 0, %s86
    %s88 = sphi 0, %s86
    %s89 = sphi 0, %s88
    %s103 = sphi 0, %s89
    %s109 = sphi 0, %s111
    %s112 = sphi 0, %s109
    %s113 = sphi 0, %s112
    %s129 = sphi 0, %s113
  $region4: #{rgbtox_forward.1} parent=0 // loop_header_branch
    %13 = sbr.rel (%p11) target = $region8
  $region5: #{rgbtox_forward.1} parent=0 // loop_body
    %s15 = ssub.s32 %s10, 1
    %s16 = ssub.s32 %s10, 2
    %s17 = sadd.s32 %s10, 1
    %s18 = ssub.s32 %s10, %s17
    %p19 = scmp.eq.s32.totalorder %s18, 0
    %s21 = sadd.s32 %s20, 1
    %s22 = scalar_select %p19, %s20, %s21
    %p25 = pneg %p19
    %p26 = scmp.eq.s32.totalorder %s10, 1
    %p27 = por %p25, %p26
    %p28 = scmp.ne.s32.totalorder %s20, %s23
    %p29 = scmp.eq.s32.totalorder %s10, 0
    %p30 = por %p28, %p29
    %p31 = scmp.ne.s32.totalorder %s20, %s23
    %p32 = scmp.eq.s32.totalorder %s15, 1
    %p33 = por %p31, %p32
    %p34 = scmp.ne.s32.totalorder %s23, %s24
    %p35 = scmp.eq.s32.totalorder %s15, 0
    %p36 = por %p34, %p35
    %p37 = scmp.ne.s32.totalorder %s23, %s24
    %p38 = scmp.eq.s32.totalorder %s16, 1
    %p39 = por %p37, %p38
    %p41 = scmp.ne.s32.totalorder %s24, %s40
    %p42 = scmp.eq.s32.totalorder %s16, 0
    %p43 = por %p41, %p42
    %s45 = sadd.s32 %s44, 1
    %p48 = scmp.eq.s32.totalorder %s10, 1
    %p49 = scmp.ne.s32.totalorder %s44, %s46
    %p50 = scmp.eq.s32.totalorder %s10, 0
    %p51 = por %p49, %p50
    %p52 = scmp.ne.s32.totalorder %s44, %s46
    %p53 = scmp.eq.s32.totalorder %s15, 1
    %p54 = por %p52, %p53
    %p55 = scmp.ne.s32.totalorder %s46, %s47
    %p56 = scmp.eq.s32.totalorder %s15, 0
    %p57 = por %p55, %p56
    %p58 = scmp.ne.s32.totalorder %s46, %s47
    %p59 = scmp.eq.s32.totalorder %s16, 1
    %p60 = por %p58, %p59
    %p62 = scmp.ne.s32.totalorder %s47, %s61
    %p63 = scmp.eq.s32.totalorder %s16, 0
    %p64 = por %p62, %p63
    %s66 = sadd.s32 %s65, 1
    %p69 = scmp.eq.s32.totalorder %s10, 1
    %p70 = scmp.ne.s32.totalorder %s65, %s67
    %p71 = scmp.eq.s32.totalorder %s10, 0
    %p72 = por %p70, %p71
    %p73 = scmp.ne.s32.totalorder %s65, %s67
    %p74 = scmp.eq.s32.totalorder %s15, 1
    %p75 = por %p73, %p74
    %p76 = scmp.ne.s32.totalorder %s67, %s68
    %p77 = scmp.eq.s32.totalorder %s15, 0
    %p78 = por %p76, %p77
    %p79 = scmp.ne.s32.totalorder %s67, %s68
    %p80 = scmp.eq.s32.totalorder %s16, 1
    %p81 = por %p79, %p80
    %p83 = scmp.ne.s32.totalorder %s68, %s82
    %p84 = scmp.eq.s32.totalorder %s16, 0
    %p85 = por %p83, %p84
    %s87 = sadd.s32 %s86, 1
    %p90 = scmp.eq.s32.totalorder %s10, 1
    %p91 = scmp.ne.s32.totalorder %s86, %s88
    %p92 = scmp.eq.s32.totalorder %s10, 0
    %p93 = por %p91, %p92
    %p94 = scmp.ne.s32.totalorder %s86, %s88
    %p95 = scmp.eq.s32.totalorder %s15, 1
    %p96 = por %p94, %p95
    %p97 = scmp.ne.s32.totalorder %s88, %s89
    %p98 = scmp.eq.s32.totalorder %s15, 0
    %p99 = por %p97, %p98
    %p100 = scmp.ne.s32.totalorder %s88, %s89
    %p101 = scmp.eq.s32.totalorder %s16, 1
    %p102 = por %p100, %p101
    %p104 = scmp.ne.s32.totalorder %s89, %s103
    %p105 = scmp.eq.s32.totalorder %s16, 0
    %p106 = por %p104, %p105
    %s107 = ssub.s32 %s10, %s17
    %p108 = scmp.eq.s32.totalorder %s107, 0
    %s110 = sadd.s32 %s109, 1
    %s111 = scalar_select %p108, %s109, %s110
    %p114 = pneg %p108
    %p115 = scmp.eq.s32.totalorder %s10, 1
    %p116 = por %p114, %p115
    %p117 = scmp.ne.s32.totalorder %s109, %s112
    %p118 = scmp.eq.s32.totalorder %s10, 0
    %p119 = por %p117, %p118
    %p120 = scmp.ne.s32.totalorder %s109, %s112
    %p121 = scmp.eq.s32.totalorder %s15, 1
    %p122 = por %p120, %p121
    %p123 = scmp.ne.s32.totalorder %s112, %s113
    %p124 = scmp.eq.s32.totalorder %s15, 0
    %p125 = por %p123, %p124
    %p126 = scmp.ne.s32.totalorder %s112, %s113
    %p127 = scmp.eq.s32.totalorder %s16, 1
    %p128 = por %p126, %p127
    %p130 = scmp.ne.s32.totalorder %s113, %s129
    %p131 = scmp.eq.s32.totalorder %s16, 0
    %p132 = por %p130, %p131
    %p133 = scmp.le.s32.totalorder 1, %s10
    %p134 = scmp.lt.s32.totalorder %s10, 3
    %p135 = pnand %p133, %p134
    %p136 = pneg %p135
    // Predicated region
    $region9: #{rgbtox_forward.1} parent=5 // pred_check
      _
    $region10: #{rgbtox_forward.1} parent=5 // pred_check_branch
      %138 = sbr.rel (%p135) target = $region12
    $region11: #{rgbtox_forward.1} parent=5 // pred_region
      %s139 = ssub.s32 %s10, 1
      // Predicated region
      $region13: #{rgbtox_forward.1} parent=11 // pred_check
        %p140 = pneg %p57
      $region14: #{rgbtox_forward.1} parent=11 // pred_check_branch
        %142 = sbr.rel (%p140) target = $region16
      $region15: #{rgbtox_forward.1} parent=11 // pred_region
        _
      $region16: #{rgbtox_forward.1} parent=11 // pred_fallthru
        _
      // Predicated region
      $region17: #{rgbtox_forward.1} parent=11 // pred_check
        %p143 = pneg %p78
      $region18: #{rgbtox_forward.1} parent=11 // pred_check_branch
        %145 = sbr.rel (%p143) target = $region20
      $region19: #{rgbtox_forward.1} parent=11 // pred_region
        _
      $region20: #{rgbtox_forward.1} parent=11 // pred_fallthru
        _
      // Predicated region
      $region21: #{rgbtox_forward.1} parent=11 // pred_check
        %p146 = pneg %p99
      $region22: #{rgbtox_forward.1} parent=11 // pred_check_branch
        %148 = sbr.rel (%p146) target = $region24
      $region23: #{rgbtox_forward.1} parent=11 // pred_region
        _
      $region24: #{rgbtox_forward.1} parent=11 // pred_fallthru
        _
    $region12: #{rgbtox_forward.1} parent=5 // pred_fallthru
      _
    %p149 = scmp.lt.s32.totalorder %s10, 2
    // Predicated region
    $region25: #{rgbtox_forward.1} parent=5 // pred_check
      %p150 = pneg %p149
    $region26: #{rgbtox_forward.1} parent=5 // pred_check_branch
      %152 = sbr.rel (%p150) target = $region28
    $region27: #{rgbtox_forward.1} parent=5 // pred_region
      // Predicated region
      $region29: #{rgbtox_forward.1} parent=27 // pred_check
        %p153 = pneg %p30
      $region30: #{rgbtox_forward.1} parent=27 // pred_check_branch
        %155 = sbr.rel (%p153) target = $region32
      $region31: #{rgbtox_forward.1} parent=27 // pred_region
        %p156 = scmp.lt.s32.totalorder %s10, 1
        %s157 = scalar_select %p156, %s10, 1
        %s158 = smul.addr %s157, 3
        %s159 = smul.addr %s158, 2
        %s160 = scalar_lea.vmem %s0, %s159
      $region32: #{rgbtox_forward.1} parent=27 // pred_fallthru
        _
    $region28: #{rgbtox_forward.1} parent=5 // pred_fallthru
      _
    %p161 = scmp.le.s32.totalorder 1, %s10
    %p162 = scmp.lt.s32.totalorder %s10, 3
    %p163 = pnand %p161, %p162
    %p164 = pneg %p163
    // Predicated region
    $region33: #{rgbtox_forward.1} parent=5 // pred_check
      _
    $region34: #{rgbtox_forward.1} parent=5 // pred_check_branch
      %166 = sbr.rel (%p163) target = $region36
    $region35: #{rgbtox_forward.1} parent=5 // pred_region
      %s167 = ssub.s32 %s10, 1
      %p168 = scmp.lt.s32.totalorder %s15, 1
      %s169 = scalar_select %p168, %s15, 1
      %s170 = smul.addr %s169, 3
      %s171 = smul.addr %s170, 2
      %s172 = scalar_lea.vmem %s0, %s171
      %p173 = pneg %p36
      %p174 = pneg %p33
      %p175 = pneg %p57
      %p176 = pneg %p54
      %p177 = pneg %p78
      %p178 = pneg %p75
      %p179 = pneg %p99
      %p180 = pneg %p96
      %p181 = pneg %p125
      %p182 = pneg %p122
      %p183 = scmp.lt.s32.totalorder %s15, 1
      %s184 = scalar_select %p183, %s15, 1
      %s185 = smul.addr %s184, 3
      %s186 = smul.addr %s185, 4
      %s187 = scalar_lea.vmem %s4, %s186
      %p188 = scmp.lt.s32.totalorder %s15, 1
      %s189 = scalar_select %p188, %s15, 1
      %s190 = smul.addr %s189, 3
      %s191 = smul.addr %s190, 2
      %s192 = scalar_lea.vmem %s0, %s191
      %p193 = scmp.lt.s32.totalorder %s15, 1
      %s194 = scalar_select %p193, %s15, 1
      %s195 = smul.addr %s194, 3
      %s196 = smul.addr %s195, 4
      %s197 = scalar_lea.vmem %s4, %s196
      %v200 = vld [vmem:[%s192] sm:$0x3f]
      %v201 = vunpack.c.l.bf16 %v200
      %v202 = vunpack.c.h.bf16 %v200
      %v204 = vcombine.high %v201, %v201
      %206 = vst [vmem:[#allocation2] sm:$0x7] %v201
      %207 = vst [vmem:[#allocation2 + $0x8] sm:$0x7] %v204
      %208 = vst [vmem:[#allocation2 + $0x10] sm:$0x7] %v202
      %209 = vrot.lane.b32.xlu0 %v201, 127
      %v210 = vpop.permute.xlu0 %209
      %211 = vrot.lane.b32.xlu0 %v204, 127
      %v212 = vpop.permute.xlu0 %211
      %213 = vrot.lane.b32.xlu0 %v202, 127
      %v214 = vpop.permute.xlu0 %213
      %v215 = vlaneseq
      %v216 = vand.u32 %v215, 127
      %vm217 = vcmp.lt.s32.totalorder %v216, 127
      %v218 = vsel %vm217, %v212, %v214
      %v219 = vsel %vm217, %v210, %v212
      %v220 = vsel %vm217, %v214, %v210
      %v224 = vrot.slane %v219, 5
      %v225 = vrot.slane %v218, 5
      %v226 = vrot.slane %v220, 5
      %230 = vst [vmem:[#allocation2] sm:$0x38] %v224
      %231 = vst [vmem:[#allocation2 + $0x8] sm:$0x38] %v225
      %232 = vst [vmem:[#allocation2 + $0x10] sm:$0x38] %v226
      %233 = vrot.lane.b32.xlu0 %v201, 126
      %v234 = vpop.permute.xlu0 %233
      %235 = vrot.lane.b32.xlu0 %v204, 126
      %v236 = vpop.permute.xlu0 %235
      %237 = vrot.lane.b32.xlu0 %v202, 126
      %v238 = vpop.permute.xlu0 %237
      %vm239 = vcmp.lt.s32.totalorder %v216, 126
      %v240 = vsel %vm239, %v236, %v238
      %v241 = vsel %vm239, %v234, %v236
      %v242 = vsel %vm239, %v238, %v234
      %v246 = vrot.slane %v241, 2
      %v247 = vrot.slane %v240, 2
      %v248 = vrot.slane %v242, 2
      %252 = vst [vmem:[#allocation2] sm:$0xc0] %v246
      %253 = vst [vmem:[#allocation2 + $0x8] sm:$0xc0] %v247
      %254 = vst [vmem:[#allocation2 + $0x10] sm:$0xc0] %v248
      %255 = vst [vmem:[#allocation2 + $0x18] sm:$0x1] %v246
      %256 = vst [vmem:[#allocation2 + $0x20] sm:$0x1] %v247
      %257 = vst [vmem:[#allocation2 + $0x28] sm:$0x1] %v248
      %258 = vrot.lane.b32.xlu0 %v201, 110
      %v259 = vpop.permute.xlu0 %258
      %260 = vrot.lane.b32.xlu0 %v204, 110
      %v261 = vpop.permute.xlu0 %260
      %262 = vrot.lane.b32.xlu0 %v202, 110
      %v263 = vpop.permute.xlu0 %262
      %vm264 = vcmp.lt.s32.totalorder %v216, 110
      %v265 = vsel %vm264, %v261, %v263
      %v266 = vsel %vm264, %v259, %v261
      %v267 = vsel %vm264, %v263, %v259
      %v271 = vrot.slane %v266, 7
      %v272 = vrot.slane %v265, 7
      %v273 = vrot.slane %v267, 7
      %277 = vst [vmem:[#allocation2 + $0x18] sm:$0xe] %v271
      %278 = vst [vmem:[#allocation2 + $0x20] sm:$0xe] %v272
      %279 = vst [vmem:[#allocation2 + $0x28] sm:$0xe] %v273
      %280 = vrot.lane.b32.xlu0 %v201, 109
      %v281 = vpop.permute.xlu0 %280
      %282 = vrot.lane.b32.xlu0 %v204, 109
      %v283 = vpop.permute.xlu0 %282
      %284 = vrot.lane.b32.xlu0 %v202, 109
      %v285 = vpop.permute.xlu0 %284
      %vm286 = vcmp.lt.s32.totalorder %v216, 109
      %v287 = vsel %vm286, %v283, %v285
      %v288 = vsel %vm286, %v281, %v283
      %v289 = vsel %vm286, %v285, %v281
      %v293 = vrot.slane %v288, 4
      %v294 = vrot.slane %v287, 4
      %v295 = vrot.slane %v289, 4
      %299 = vst [vmem:[#allocation2 + $0x18] sm:$0x70] %v293
      %300 = vst [vmem:[#allocation2 + $0x20] sm:$0x70] %v294
      %301 = vst [vmem:[#allocation2 + $0x28] sm:$0x70] %v295
      %302 = vrot.lane.b32.xlu0 %v201, 108
      %v303 = vpop.permute.xlu0 %302
      %304 = vrot.lane.b32.xlu0 %v204, 108
      %v305 = vpop.permute.xlu0 %304
      %306 = vrot.lane.b32.xlu0 %v202, 108
      %v307 = vpop.permute.xlu0 %306
      %vm308 = vcmp.lt.s32.totalorder %v216, 108
      %v309 = vsel %vm308, %v305, %v307
      %v310 = vsel %vm308, %v303, %v305
      %v311 = vsel %vm308, %v307, %v303
      %v315 = vrot.slane %v310, 1
      %v316 = vrot.slane %v309, 1
      %v317 = vrot.slane %v311, 1
      %321 = vst [vmem:[#allocation2 + $0x18] sm:$0x80] %v315
      %322 = vst [vmem:[#allocation2 + $0x20] sm:$0x80] %v316
      %323 = vst [vmem:[#allocation2 + $0x28] sm:$0x80] %v317
      %324 = vst [vmem:[#allocation2 + $0x30] sm:$0x3] %v315
      %325 = vst [vmem:[#allocation2 + $0x38] sm:$0x3] %v316
      %326 = vst [vmem:[#allocation2 + $0x40] sm:$0x3] %v317
      %327 = vrot.lane.b32.xlu0 %v201, 92
      %v328 = vpop.permute.xlu0 %327
      %329 = vrot.lane.b32.xlu0 %v204, 92
      %v330 = vpop.permute.xlu0 %329
      %331 = vrot.lane.b32.xlu0 %v202, 92
      %v332 = vpop.permute.xlu0 %331
      %vm333 = vcmp.lt.s32.totalorder %v216, 92
      %v334 = vsel %vm333, %v330, %v332
      %v335 = vsel %vm333, %v328, %v330
      %v336 = vsel %vm333, %v332, %v328
      %v340 = vrot.slane %v335, 6
      %v341 = vrot.slane %v334, 6
      %v342 = vrot.slane %v336, 6
      %346 = vst [vmem:[#allocation2 + $0x30] sm:$0x1c] %v340
      %347 = vst [vmem:[#allocation2 + $0x38] sm:$0x1c] %v341
      %348 = vst [vmem:[#allocation2 + $0x40] sm:$0x1c] %v342
      %349 = vrot.lane.b32.xlu0 %v201, 91
      %v350 = vpop.permute.xlu0 %349
      %351 = vrot.lane.b32.xlu0 %v204, 91
      %v352 = vpop.permute.xlu0 %351
      %353 = vrot.lane.b32.xlu0 %v202, 91
      %v354 = vpop.permute.xlu0 %353
      %vm355 = vcmp.lt.s32.totalorder %v216, 91
      %v356 = vsel %vm355, %v352, %v354
      %v357 = vsel %vm355, %v350, %v352
      %v358 = vsel %vm355, %v354, %v350
      %v362 = vrot.slane %v357, 3
      %v363 = vrot.slane %v356, 3
      %v364 = vrot.slane %v358, 3
      %368 = vst [vmem:[#allocation2 + $0x30] sm:$0xe0] %v362
      %369 = vst [vmem:[#allocation2 + $0x38] sm:$0xe0] %v363
      %370 = vst [vmem:[#allocation2 + $0x40] sm:$0xe0] %v364
      %371 = vrot.lane.b32.xlu0 %v201, 90
      %v372 = vpop.permute.xlu0 %371
      %373 = vrot.lane.b32.xlu0 %v204, 90
      %v374 = vpop.permute.xlu0 %373
      %375 = vrot.lane.b32.xlu0 %v202, 90
      %v376 = vpop.permute.xlu0 %375
      %vm377 = vcmp.lt.s32.totalorder %v216, 90
      %v378 = vsel %vm377, %v374, %v376
      %v379 = vsel %vm377, %v372, %v374
      %v380 = vsel %vm377, %v376, %v372
      %381 = vst [vmem:[#allocation2 + $0x48] sm:$0x7] %v379
      %382 = vst [vmem:[#allocation2 + $0x50] sm:$0x7] %v378
      %383 = vst [vmem:[#allocation2 + $0x58] sm:$0x7] %v380
      %v384 = vlaneseq
      %vm385 = vcmp.ge.s32.totalorder %v384, 0
      %vm386 = vcmp.lt.s32.totalorder %v384, 384
      %vm387 = vmand %vm385, %vm386
      %s388 = scalar_lea.vmem [#allocation2], 75
      %389 = vst.msk [vmem:[%s388] ss:$8 sm:$0x7] %vm387, 1.0
      %390 = vst.msk [vmem:[%s388] ss:$8 sm:$0x0] %vm387, 1.0
      %v391 = vld [vmem:[#allocation2] sm:$0xff]
      %v392 = vld [vmem:[#allocation2 + $0x8] sm:$0xff]
      %v393 = vld [vmem:[#allocation2 + $0x10] sm:$0xff]
      %v394 = vld [vmem:[#allocation2 + $0x18] sm:$0xff]
      %v395 = vld [vmem:[#allocation2 + $0x20] sm:$0xff]
      %v396 = vld [vmem:[#allocation2 + $0x28] sm:$0xff]
      %v397 = vld [vmem:[#allocation2 + $0x30] sm:$0xff]
      %v398 = vld [vmem:[#allocation2 + $0x38] sm:$0xff]
      %v399 = vld [vmem:[#allocation2 + $0x40] sm:$0xff]
      %v400 = vld [vmem:[#allocation2 + $0x48] sm:$0xf]
      %v401 = vld [vmem:[#allocation2 + $0x50] sm:$0xf]
      %v402 = vld [vmem:[#allocation2 + $0x58] sm:$0xf]
      %v403 = vpack.c.bf16 %v394, %v391
      %v404 = vpack.c.bf16 %v395, %v392
      %v405 = vpack.c.bf16 %v396, %v393
      %v406 = vpack.c.bf16 %v400, %v397
      %v407 = vpack.c.bf16 %v401, %v398
      %v408 = vpack.c.bf16 %v402, %v399
      %v409 = vld [vmem:[%s1] sm:$0xf]
      %v410 = vld [vmem:[%s1 + $0x4] sm:$0xf]
      %v411 = vld [vmem:[%s1 + $0x8] sm:$0xf]
      %v412 = vld [vmem:[%s1 + $0xc] sm:$0xf]
      %v413 = vld [vmem:[%s1 + $0x10] sm:$0xf]
      %v414 = vld [vmem:[%s1 + $0x14] sm:$0xf]
      %v415 = vld [vmem:[%s1 + $0x18] sm:$0xf]
      %v416 = vld [vmem:[%s1 + $0x1c] sm:$0xf]
      %v425 = vunpack.c.l.b16 %v409
      %v426 = vunpack.c.l.b16 %v410
      %v427 = vunpack.c.l.b16 %v411
      %v428 = vunpack.c.l.b16 %v412
      %v429 = vunpack.c.l.b16 %v413
      %v430 = vunpack.c.l.b16 %v414
      %v431 = vunpack.c.l.b16 %v415
      %v432 = vunpack.c.l.b16 %v416
      %v433 = vpack.c.b16 %v426, %v425
      %v434 = vpack.c.b16 %v428, %v427
      %v435 = vpack.c.b16 %v430, %v429
      %v436 = vpack.c.b16 %v432, %v431
      %vm437 = vcmask 228352
      %v439 = vsel %vm437, %v433, 0
      %v442 = vsel %vm437, %v434, 0
      %v445 = vsel %vm437, %v435, 0
      %v448 = vsel %vm437, %v436, 0
      %vm450 = vcmask 1045504
      %v452 = vsel %vm450, %v406, 0
      %v455 = vsel %vm450, %v407, 0
      %v458 = vsel %vm450, %v408, 0
      %460 = vmatprep.subr.bf16.mxu0 0
      %461 = vmatpush1.bf16.msra.mxu0 0
      %462 = vmatprep.subr.bf16.mxu0 0
      %463 = vmatpush1.bf16.msra.mxu0 0
      %464 = vmatprep.subr.bf16.mxu0 0
      %465 = vmatpush1.bf16.msra.mxu0 0
      %466 = vmatprep.subr.bf16.mxu0 0
      %467 = vmatpush1.bf16.msra.mxu0 0
      %468 = vmatprep.subr.bf16.mxu0 0
      %469 = vmatpush1.bf16.msra.mxu0 0
      %470 = vmatprep.subr.bf16.mxu0 0
      %471 = vmatpush1.bf16.msra.mxu0 0
      %472 = vmatprep.subr.bf16.mxu0 %v455
      %473 = vmatpush1.bf16.msra.mxu0 %v452
      %474 = vmatprep.subr.bf16.mxu0 %v404
      %475 = vmatpush1.bf16.msra.mxu0 %v403
      %476 = vmatprep.subr.bf16.mxu0 0
      %477 = vmatpush2.bf16.msra.mxu0 0
      %478 = vmatprep.subr.bf16.mxu0 0
      %479 = vmatpush2.bf16.msra.mxu0 0
      %480 = vmatprep.subr.bf16.mxu0 0
      %481 = vmatpush2.bf16.msra.mxu0 0
      %482 = vmatprep.subr.bf16.mxu0 0
      %483 = vmatpush2.bf16.msra.mxu0 0
      %484 = vmatprep.subr.bf16.mxu0 0
      %485 = vmatpush2.bf16.msra.mxu0 0
      %486 = vmatprep.subr.bf16.mxu0 0
      %487 = vmatpush2.bf16.msra.mxu0 0
      %488 = vmatprep.subr.bf16.mxu0 0
      %489 = vmatpush2.bf16.msra.mxu0 0
      %490 = vmatprep.subr.bf16.mxu0 0
      %491 = vmatpush2.bf16.msra.mxu0 0
      %492 = vmatprep.mubr.bf16.mxu0 0
      %493 = vmatmul.mubr.bf16.gmra.mxu0 %v439
      %v494 = vpop.f32.mrf.mxu0
      %v495 = vadd.f32 0.0, %v494
      %v496 = vpop.f32.mrf.mxu0
      %v497 = vadd.f32 0.0, %v496
      %v498 = vpop.f32.mrf.mxu0
      %v499 = vadd.f32 0.0, %v498
      %v500 = vpop.f32.mrf.mxu0
      %v501 = vadd.f32 0.0, %v500
      %502 = vmatprep.mubr.bf16.mxu0 0
      %503 = vmatmul.mubr.bf16.gmra.mxu0 %v442
      %v504 = vpop.f32.mrf.mxu0
      %v505 = vadd.f32 0.0, %v504
      %v506 = vpop.f32.mrf.mxu0
      %v507 = vadd.f32 0.0, %v506
      %v508 = vpop.f32.mrf.mxu0
      %v509 = vadd.f32 0.0, %v508
      %v510 = vpop.f32.mrf.mxu0
      %v511 = vadd.f32 0.0, %v510
      %512 = vmatprep.mubr.bf16.mxu0 0
      %513 = vmatmul.mubr.bf16.gmra.mxu0 %v445
      %v514 = vpop.f32.mrf.mxu0
      %v515 = vadd.f32 0.0, %v514
      %v516 = vpop.f32.mrf.mxu0
      %v517 = vadd.f32 0.0, %v516
      %v518 = vpop.f32.mrf.mxu0
      %v519 = vadd.f32 0.0, %v518
      %v520 = vpop.f32.mrf.mxu0
      %v521 = vadd.f32 0.0, %v520
      %522 = vmatprep.mubr.bf16.mxu0 0
      %523 = vmatmul.mubr.bf16.gmra.mxu0 %v448
      %v524 = vpop.f32.mrf.mxu0
      %v525 = vadd.f32 0.0, %v524
      %v526 = vpop.f32.mrf.mxu0
      %v527 = vadd.f32 0.0, %v526
      %v528 = vpop.f32.mrf.mxu0
      %v529 = vadd.f32 0.0, %v528
      %v530 = vpop.f32.mrf.mxu0
      %v531 = vadd.f32 0.0, %v530
      %532 = vdwg.mxu0
      %533 = vmatprep.subr.bf16.mxu0 0
      %534 = vmatpush1.bf16.msra.mxu0 0
      %535 = vmatprep.subr.bf16.mxu0 0
      %536 = vmatpush1.bf16.msra.mxu0 0
      %537 = vmatprep.subr.bf16.mxu0 0
      %538 = vmatpush1.bf16.msra.mxu0 0
      %539 = vmatprep.subr.bf16.mxu0 0
      %540 = vmatpush1.bf16.msra.mxu0 0
      %541 = vmatprep.subr.bf16.mxu0 0
      %542 = vmatpush1.bf16.msra.mxu0 0
      %543 = vmatprep.subr.bf16.mxu0 0
      %544 = vmatpush1.bf16.msra.mxu0 0
      %545 = vmatprep.subr.bf16.mxu0 0
      %546 = vmatpush1.bf16.msra.mxu0 %v458
      %547 = vmatprep.subr.bf16.mxu0 0
      %548 = vmatpush1.bf16.msra.mxu0 %v405
      %549 = vmatprep.subr.bf16.mxu0 0
      %550 = vmatpush2.bf16.msra.mxu0 0
      %551 = vmatprep.subr.bf16.mxu0 0
      %552 = vmatpush2.bf16.msra.mxu0 0
      %553 = vmatprep.subr.bf16.mxu0 0
      %554 = vmatpush2.bf16.msra.mxu0 0
      %555 = vmatprep.subr.bf16.mxu0 0
      %556 = vmatpush2.bf16.msra.mxu0 0
      %557 = vmatprep.subr.bf16.mxu0 0
      %558 = vmatpush2.bf16.msra.mxu0 0
      %559 = vmatprep.subr.bf16.mxu0 0
      %560 = vmatpush2.bf16.msra.mxu0 0
      %561 = vmatprep.subr.bf16.mxu0 0
      %562 = vmatpush2.bf16.msra.mxu0 0
      %563 = vmatprep.subr.bf16.mxu0 0
      %564 = vmatpush2.bf16.msra.mxu0 0
      %565 = vmatprep.mubr.bf16.mxu0 0
      %566 = vmatmul.mubr.bf16.gmra.mxu0 %v439
      %v567 = vpop.f32.mrf.mxu0
      %v568 = vadd.f32 0.0, %v567
      %v569 = vpop.f32.mrf.mxu0
      %v570 = vpop.f32.mrf.mxu0
      %v571 = vadd.f32 0.0, %v570
      %v572 = vpop.f32.mrf.mxu0
      %573 = vmatprep.mubr.bf16.mxu0 0
      %574 = vmatmul.mubr.bf16.gmra.mxu0 %v442
      %v575 = vpop.f32.mrf.mxu0
      %v576 = vadd.f32 0.0, %v575
      %v577 = vpop.f32.mrf.mxu0
      %v578 = vpop.f32.mrf.mxu0
      %v579 = vadd.f32 0.0, %v578
      %v580 = vpop.f32.mrf.mxu0
      %581 = vmatprep.mubr.bf16.mxu0 0
      %582 = vmatmul.mubr.bf16.gmra.mxu0 %v445
      %v583 = vpop.f32.mrf.mxu0
      %v584 = vadd.f32 0.0, %v583
      %v585 = vpop.f32.mrf.mxu0
      %v586 = vpop.f32.mrf.mxu0
      %v587 = vadd.f32 0.0, %v586
      %v588 = vpop.f32.mrf.mxu0
      %589 = vmatprep.mubr.bf16.mxu0 0
      %590 = vmatmul.mubr.bf16.gmra.mxu0 %v448
      %v591 = vpop.f32.mrf.mxu0
      %v592 = vadd.f32 0.0, %v591
      %v593 = vpop.f32.mrf.mxu0
      %v594 = vpop.f32.mrf.mxu0
      %v595 = vadd.f32 0.0, %v594
      %v596 = vpop.f32.mrf.mxu0
      %597 = vdwg.mxu0
      %598 = vrot.lane.b32.xlu0 %v495, 127
      %v599 = vpop.permute.xlu0 %598
      %600 = vrot.lane.b32.xlu0 %v499, 127
      %v601 = vpop.permute.xlu0 %600
      %602 = vrot.lane.b32.xlu0 %v505, 127
      %v603 = vpop.permute.xlu0 %602
      %604 = vrot.lane.b32.xlu0 %v509, 127
      %v605 = vpop.permute.xlu0 %604
      %606 = vrot.lane.b32.xlu0 %v515, 127
      %v607 = vpop.permute.xlu0 %606
      %608 = vrot.lane.b32.xlu0 %v519, 127
      %v609 = vpop.permute.xlu0 %608
      %610 = vrot.lane.b32.xlu0 %v525, 127
      %v611 = vpop.permute.xlu0 %610
      %612 = vrot.lane.b32.xlu0 %v529, 127
      %v613 = vpop.permute.xlu0 %612
      %614 = vrot.lane.b32.xlu0 %v497, 127
      %v615 = vpop.permute.xlu0 %614
      %616 = vrot.lane.b32.xlu0 %v501, 127
      %v617 = vpop.permute.xlu0 %616
      %618 = vrot.lane.b32.xlu0 %v507, 127
      %v619 = vpop.permute.xlu0 %618
      %620 = vrot.lane.b32.xlu0 %v511, 127
      %v621 = vpop.permute.xlu0 %620
      %622 = vrot.lane.b32.xlu0 %v517, 127
      %v623 = vpop.permute.xlu0 %622
      %624 = vrot.lane.b32.xlu0 %v521, 127
      %v625 = vpop.permute.xlu0 %624
      %626 = vrot.lane.b32.xlu0 %v527, 127
      %v627 = vpop.permute.xlu0 %626
      %628 = vrot.lane.b32.xlu0 %v531, 127
      %v629 = vpop.permute.xlu0 %628
      %630 = vrot.lane.b32.xlu0 %v568, 127
      %v631 = vpop.permute.xlu0 %630
      %632 = vrot.lane.b32.xlu0 %v571, 127
      %v633 = vpop.permute.xlu0 %632
      %634 = vrot.lane.b32.xlu0 %v576, 127
      %v635 = vpop.permute.xlu0 %634
      %636 = vrot.lane.b32.xlu0 %v579, 127
      %v637 = vpop.permute.xlu0 %636
      %638 = vrot.lane.b32.xlu0 %v584, 127
      %v639 = vpop.permute.xlu0 %638
      %640 = vrot.lane.b32.xlu0 %v587, 127
      %v641 = vpop.permute.xlu0 %640
      %642 = vrot.lane.b32.xlu0 %v592, 127
      %v643 = vpop.permute.xlu0 %642
      %644 = vrot.lane.b32.xlu0 %v595, 127
      %v645 = vpop.permute.xlu0 %644
      %v646 = vsel %vm217, %v615, %v631
      %v647 = vsel %vm217, %v617, %v633
      %v648 = vsel %vm217, %v619, %v635
      %v649 = vsel %vm217, %v621, %v637
      %v650 = vsel %vm217, %v623, %v639
      %v651 = vsel %vm217, %v625, %v641
      %v652 = vsel %vm217, %v627, %v643
      %v653 = vsel %vm217, %v629, %v645
      %v654 = vsel %vm217, %v599, %v615
      %v655 = vsel %vm217, %v601, %v617
      %v656 = vsel %vm217, %v603, %v619
      %v657 = vsel %vm217, %v605, %v621
      %v658 = vsel %vm217, %v607, %v623
      %v659 = vsel %vm217, %v609, %v625
      %v660 = vsel %vm217, %v611, %v627
      %v661 = vsel %vm217, %v613, %v629
      %v662 = vsel %vm217, %v631, %v599
      %v663 = vsel %vm217, %v633, %v601
      %v664 = vsel %vm217, %v635, %v603
      %v665 = vsel %vm217, %v637, %v605
      %v666 = vsel %vm217, %v639, %v607
      %v667 = vsel %vm217, %v641, %v609
      %v668 = vsel %vm217, %v643, %v611
      %v669 = vsel %vm217, %v645, %v613
      %v670 = vmax.f32 %v495, %v654
      %v671 = vmax.f32 %v497, %v646
      %v672 = vmax.f32 %v568, %v662
      %v673 = vmax.f32 %v499, %v655
      %v674 = vmax.f32 %v501, %v647
      %v675 = vmax.f32 %v571, %v663
      %v676 = vmax.f32 %v505, %v656
      %v677 = vmax.f32 %v507, %v648
      %v678 = vmax.f32 %v576, %v664
      %v679 = vmax.f32 %v509, %v657
      %v680 = vmax.f32 %v511, %v649
      %v681 = vmax.f32 %v579, %v665
      %v682 = vmax.f32 %v515, %v658
      %v683 = vmax.f32 %v517, %v650
      %v684 = vmax.f32 %v584, %v666
      %v685 = vmax.f32 %v519, %v659
      %v686 = vmax.f32 %v521, %v651
      %v687 = vmax.f32 %v587, %v667
      %v688 = vmax.f32 %v525, %v660
      %v689 = vmax.f32 %v527, %v652
      %v690 = vmax.f32 %v592, %v668
      %v691 = vmax.f32 %v529, %v661
      %v692 = vmax.f32 %v531, %v653
      %v693 = vmax.f32 %v595, %v669
      %694 = vrot.lane.b32.xlu0 %v670, 110
      %v695 = vpop.permute.xlu0 %694
      %696 = vrot.lane.b32.xlu0 %v673, 110
      %v697 = vpop.permute.xlu0 %696
      %698 = vrot.lane.b32.xlu0 %v676, 110
      %v699 = vpop.permute.xlu0 %698
      %700 = vrot.lane.b32.xlu0 %v679, 110
      %v701 = vpop.permute.xlu0 %700
      %702 = vrot.lane.b32.xlu0 %v682, 110
      %v703 = vpop.permute.xlu0 %702
      %704 = vrot.lane.b32.xlu0 %v685, 110
      %v705 = vpop.permute.xlu0 %704
      %706 = vrot.lane.b32.xlu0 %v688, 110
      %v707 = vpop.permute.xlu0 %706
      %708 = vrot.lane.b32.xlu0 %v691, 110
      %v709 = vpop.permute.xlu0 %708
      %710 = vrot.lane.b32.xlu0 %v671, 110
      %v711 = vpop.permute.xlu0 %710
      %712 = vrot.lane.b32.xlu0 %v674, 110
      %v713 = vpop.permute.xlu0 %712
      %714 = vrot.lane.b32.xlu0 %v677, 110
      %v715 = vpop.permute.xlu0 %714
      %716 = vrot.lane.b32.xlu0 %v680, 110
      %v717 = vpop.permute.xlu0 %716
      %718 = vrot.lane.b32.xlu0 %v683, 110
      %v719 = vpop.permute.xlu0 %718
      %720 = vrot.lane.b32.xlu0 %v686, 110
      %v721 = vpop.permute.xlu0 %720
      %722 = vrot.lane.b32.xlu0 %v689, 110
      %v723 = vpop.permute.xlu0 %722
      %724 = vrot.lane.b32.xlu0 %v692, 110
      %v725 = vpop.permute.xlu0 %724
      %726 = vrot.lane.b32.xlu0 %v672, 110
      %v727 = vpop.permute.xlu0 %726
      %728 = vrot.lane.b32.xlu0 %v675, 110
      %v729 = vpop.permute.xlu0 %728
      %730 = vrot.lane.b32.xlu0 %v678, 110
      %v731 = vpop.permute.xlu0 %730
      %732 = vrot.lane.b32.xlu0 %v681, 110
      %v733 = vpop.permute.xlu0 %732
      %734 = vrot.lane.b32.xlu0 %v684, 110
      %v735 = vpop.permute.xlu0 %734
      %736 = vrot.lane.b32.xlu0 %v687, 110
      %v737 = vpop.permute.xlu0 %736
      %738 = vrot.lane.b32.xlu0 %v690, 110
      %v739 = vpop.permute.xlu0 %738
      %740 = vrot.lane.b32.xlu0 %v693, 110
      %v741 = vpop.permute.xlu0 %740
      %v742 = vsel %vm264, %v711, %v727
      %v743 = vsel %vm264, %v713, %v729
      %v744 = vsel %vm264, %v715, %v731
      %v745 = vsel %vm264, %v717, %v733
      %v746 = vsel %vm264, %v719, %v735
      %v747 = vsel %vm264, %v721, %v737
      %v748 = vsel %vm264, %v723, %v739
      %v749 = vsel %vm264, %v725, %v741
      %v750 = vsel %vm264, %v695, %v711
      %v751 = vsel %vm264, %v697, %v713
      %v752 = vsel %vm264, %v699, %v715
      %v753 = vsel %vm264, %v701, %v717
      %v754 = vsel %vm264, %v703, %v719
      %v755 = vsel %vm264, %v705, %v721
      %v756 = vsel %vm264, %v707, %v723
      %v757 = vsel %vm264, %v709, %v725
      %v758 = vsel %vm264, %v727, %v695
      %v759 = vsel %vm264, %v729, %v697
      %v760 = vsel %vm264, %v731, %v699
      %v761 = vsel %vm264, %v733, %v701
      %v762 = vsel %vm264, %v735, %v703
      %v763 = vsel %vm264, %v737, %v705
      %v764 = vsel %vm264, %v739, %v707
      %v765 = vsel %vm264, %v741, %v709
      %v766 = vmax.f32 %v670, %v750
      %v767 = vmax.f32 %v671, %v742
      %v768 = vmax.f32 %v672, %v758
      %v769 = vmax.f32 %v673, %v751
      %v770 = vmax.f32 %v674, %v743
      %v771 = vmax.f32 %v675, %v759
      %v772 = vmax.f32 %v676, %v752
      %v773 = vmax.f32 %v677, %v744
      %v774 = vmax.f32 %v678, %v760
      %v775 = vmax.f32 %v679, %v753
      %v776 = vmax.f32 %v680, %v745
      %v777 = vmax.f32 %v681, %v761
      %v778 = vmax.f32 %v682, %v754
      %v779 = vmax.f32 %v683, %v746
      %v780 = vmax.f32 %v684, %v762
      %v781 = vmax.f32 %v685, %v755
      %v782 = vmax.f32 %v686, %v747
      %v783 = vmax.f32 %v687, %v763
      %v784 = vmax.f32 %v688, %v756
      %v785 = vmax.f32 %v689, %v748
      %v786 = vmax.f32 %v690, %v764
      %v787 = vmax.f32 %v691, %v757
      %v788 = vmax.f32 %v692, %v749
      %v789 = vmax.f32 %v693, %v765
      %v790 = vmax.f32 %v766, 0.0
      %v791 = vmax.f32 %v767, 0.0
      %v792 = vmax.f32 %v768, 0.0
      %v793 = vmax.f32 %v769, 0.0
      %v794 = vmax.f32 %v770, 0.0
      %v795 = vmax.f32 %v771, 0.0
      %v796 = vmax.f32 %v772, 0.0
      %v797 = vmax.f32 %v773, 0.0
      %v798 = vmax.f32 %v774, 0.0
      %v799 = vmax.f32 %v775, 0.0
      %v800 = vmax.f32 %v776, 0.0
      %v801 = vmax.f32 %v777, 0.0
      %v802 = vmax.f32 %v778, 0.0
      %v803 = vmax.f32 %v779, 0.0
      %v804 = vmax.f32 %v780, 0.0
      %v805 = vmax.f32 %v781, 0.0
      %v806 = vmax.f32 %v782, 0.0
      %v807 = vmax.f32 %v783, 0.0
      %v808 = vmax.f32 %v784, 0.0
      %v809 = vmax.f32 %v785, 0.0
      %v810 = vmax.f32 %v786, 0.0
      %v811 = vmax.f32 %v787, 0.0
      %v812 = vmax.f32 %v788, 0.0
      %v813 = vmax.f32 %v789, 0.0
      %v814 = vpack.c.bf16 %v793, %v790
      %v815 = vpack.c.bf16 %v794, %v791
      %v816 = vpack.c.bf16 %v795, %v792
      %v817 = vpack.c.bf16 %v799, %v796
      %v818 = vpack.c.bf16 %v800, %v797
      %v819 = vpack.c.bf16 %v801, %v798
      %v820 = vpack.c.bf16 %v805, %v802
      %v821 = vpack.c.bf16 %v806, %v803
      %v822 = vpack.c.bf16 %v807, %v804
      %v823 = vpack.c.bf16 %v811, %v808
      %v824 = vpack.c.bf16 %v812, %v809
      %v825 = vpack.c.bf16 %v813, %v810
      %v826 = vld [vmem:[%s2] sm:$0xf]
      %v827 = vld [vmem:[%s2 + $0x4] sm:$0xf]
      %v828 = vld [vmem:[%s2 + $0x8] sm:$0xf]
      %v829 = vld [vmem:[%s2 + $0xc] sm:$0xf]
      %v834 = vunpack.c.l.b16 %v826
      %v835 = vunpack.c.l.b16 %v827
      %v836 = vunpack.c.l.b16 %v828
      %v837 = vunpack.c.l.b16 %v829
      %v838 = vpack.c.b16 %v835, %v834
      %v839 = vpack.c.b16 %v837, %v836
      %vm840 = vcmask 531456
      %v842 = vsel %vm840, %v838, 0
      %v845 = vsel %vm840, %v839, 0
      %vm847 = vcmask 1040384
      %v848 = vsel 0, 4294967295, 65535
      %v849 = vsel %vm847, %v848, 0
      %v851 = vand.u32 1065369472, %v849
      %853 = vmatprep.subr.bf16.mxu0 0
      %854 = vmatpush1.bf16.msra.mxu0 0
      %855 = vmatprep.subr.bf16.mxu0 0
      %856 = vmatpush1.bf16.msra.mxu0 0
      %857 = vmatprep.subr.bf16.mxu0 0
      %858 = vmatpush1.bf16.msra.mxu0 0
      %859 = vmatprep.subr.bf16.mxu0 %v851
      %860 = vmatpush1.bf16.msra.mxu0 %v851
      %861 = vmatprep.subr.bf16.mxu0 %v824
      %862 = vmatpush1.bf16.msra.mxu0 %v823
      %863 = vmatprep.subr.bf16.mxu0 %v821
      %864 = vmatpush1.bf16.msra.mxu0 %v820
      %865 = vmatprep.subr.bf16.mxu0 %v818
      %866 = vmatpush1.bf16.msra.mxu0 %v817
      %867 = vmatprep.subr.bf16.mxu0 %v815
      %868 = vmatpush1.bf16.msra.mxu0 %v814
      %869 = vmatprep.subr.bf16.mxu0 0
      %870 = vmatpush2.bf16.msra.mxu0 0
      %871 = vmatprep.subr.bf16.mxu0 0
      %872 = vmatpush2.bf16.msra.mxu0 0
      %873 = vmatprep.subr.bf16.mxu0 0
      %874 = vmatpush2.bf16.msra.mxu0 0
      %875 = vmatprep.subr.bf16.mxu0 0
      %876 = vmatpush2.bf16.msra.mxu0 0
      %877 = vmatprep.subr.bf16.mxu0 0
      %878 = vmatpush2.bf16.msra.mxu0 0
      %879 = vmatprep.subr.bf16.mxu0 0
      %880 = vmatpush2.bf16.msra.mxu0 0
      %881 = vmatprep.subr.bf16.mxu0 0
      %882 = vmatpush2.bf16.msra.mxu0 0
      %883 = vmatprep.subr.bf16.mxu0 0
      %884 = vmatpush2.bf16.msra.mxu0 0
      %885 = vmatprep.mubr.bf16.mxu0 0
      %886 = vmatmul.mubr.bf16.gmra.mxu0 %v842
      %v887 = vpop.f32.mrf.mxu0
      %v888 = vadd.f32 0.0, %v887
      %v889 = vpop.f32.mrf.mxu0
      %v890 = vadd.f32 0.0, %v889
      %v891 = vpop.f32.mrf.mxu0
      %v892 = vadd.f32 0.0, %v891
      %v893 = vpop.f32.mrf.mxu0
      %v894 = vadd.f32 0.0, %v893
      %895 = vmatprep.mubr.bf16.mxu0 0
      %896 = vmatmul.mubr.bf16.gmra.mxu0 %v845
      %v897 = vpop.f32.mrf.mxu0
      %v898 = vadd.f32 0.0, %v897
      %v899 = vpop.f32.mrf.mxu0
      %v900 = vadd.f32 0.0, %v899
      %v901 = vpop.f32.mrf.mxu0
      %v902 = vadd.f32 0.0, %v901
      %v903 = vpop.f32.mrf.mxu0
      %v904 = vadd.f32 0.0, %v903
      %905 = vdwg.mxu0
      %906 = vmatprep.subr.bf16.mxu0 0
      %907 = vmatpush1.bf16.msra.mxu0 0
      %908 = vmatprep.subr.bf16.mxu0 0
      %909 = vmatpush1.bf16.msra.mxu0 0
      %910 = vmatprep.subr.bf16.mxu0 0
      %911 = vmatpush1.bf16.msra.mxu0 0
      %912 = vmatprep.subr.bf16.mxu0 0
      %913 = vmatpush1.bf16.msra.mxu0 %v851
      %914 = vmatprep.subr.bf16.mxu0 0
      %915 = vmatpush1.bf16.msra.mxu0 %v825
      %916 = vmatprep.subr.bf16.mxu0 0
      %917 = vmatpush1.bf16.msra.mxu0 %v822
      %918 = vmatprep.subr.bf16.mxu0 0
      %919 = vmatpush1.bf16.msra.mxu0 %v819
      %920 = vmatprep.subr.bf16.mxu0 0
      %921 = vmatpush1.bf16.msra.mxu0 %v816
      %922 = vmatprep.subr.bf16.mxu0 0
      %923 = vmatpush2.bf16.msra.mxu0 0
      %924 = vmatprep.subr.bf16.mxu0 0
      %925 = vmatpush2.bf16.msra.mxu0 0
      %926 = vmatprep.subr.bf16.mxu0 0
      %927 = vmatpush2.bf16.msra.mxu0 0
      %928 = vmatprep.subr.bf16.mxu0 0
      %929 = vmatpush2.bf16.msra.mxu0 0
      %930 = vmatprep.subr.bf16.mxu0 0
      %931 = vmatpush2.bf16.msra.mxu0 0
      %932 = vmatprep.subr.bf16.mxu0 0
      %933 = vmatpush2.bf16.msra.mxu0 0
      %934 = vmatprep.subr.bf16.mxu0 0
      %935 = vmatpush2.bf16.msra.mxu0 0
      %936 = vmatprep.subr.bf16.mxu0 0
      %937 = vmatpush2.bf16.msra.mxu0 0
      %938 = vmatprep.mubr.bf16.mxu0 0
      %939 = vmatmul.mubr.bf16.gmra.mxu0 %v842
      %v940 = vpop.f32.mrf.mxu0
      %v941 = vadd.f32 0.0, %v940
      %v942 = vpop.f32.mrf.mxu0
      %v943 = vpop.f32.mrf.mxu0
      %v944 = vadd.f32 0.0, %v943
      %v945 = vpop.f32.mrf.mxu0
      %946 = vmatprep.mubr.bf16.mxu0 0
      %947 = vmatmul.mubr.bf16.gmra.mxu0 %v845
      %v948 = vpop.f32.mrf.mxu0
      %v949 = vadd.f32 0.0, %v948
      %v950 = vpop.f32.mrf.mxu0
      %v951 = vpop.f32.mrf.mxu0
      %v952 = vadd.f32 0.0, %v951
      %v953 = vpop.f32.mrf.mxu0
      %954 = vdwg.mxu0
      %v955 = vsub.f32 0.0, %v888
      %v956 = vsub.f32 0.0, %v890
      %v957 = vsub.f32 0.0, %v941
      %v958 = vsub.f32 0.0, %v892
      %v959 = vsub.f32 0.0, %v894
      %v960 = vsub.f32 0.0, %v944
      %v961 = vsub.f32 0.0, %v898
      %v962 = vsub.f32 0.0, %v900
      %v963 = vsub.f32 0.0, %v949
      %v964 = vsub.f32 0.0, %v902
      %v965 = vsub.f32 0.0, %v904
      %v966 = vsub.f32 0.0, %v952
      %v967 = vmul.f32 %v955, 1.442695
      %v968 = vpow.pop %v967
      %v969 = vmul.f32 %v956, 1.442695
      %v970 = vpow.pop %v969
      %v971 = vmul.f32 %v957, 1.442695
      %v972 = vpow.pop %v971
      %v973 = vmul.f32 %v958, 1.442695
      %v974 = vpow.pop %v973
      %v975 = vmul.f32 %v959, 1.442695
      %v976 = vpow.pop %v975
      %v977 = vmul.f32 %v960, 1.442695
      %v978 = vpow.pop %v977
      %v979 = vmul.f32 %v961, 1.442695
      %v980 = vpow.pop %v979
      %v981 = vmul.f32 %v962, 1.442695
      %v982 = vpow.pop %v981
      %v983 = vmul.f32 %v963, 1.442695
      %v984 = vpow.pop %v983
      %v985 = vmul.f32 %v964, 1.442695
      %v986 = vpow.pop %v985
      %v987 = vmul.f32 %v965, 1.442695
      %v988 = vpow.pop %v987
      %v989 = vmul.f32 %v966, 1.442695
      %v990 = vpow.pop %v989
      %v991 = vadd.f32 %v968, 1.0
      %v992 = vadd.f32 %v970, 1.0
      %v993 = vadd.f32 %v972, 1.0
      %v994 = vadd.f32 %v974, 1.0
      %v995 = vadd.f32 %v976, 1.0
      %v996 = vadd.f32 %v978, 1.0
      %v997 = vadd.f32 %v980, 1.0
      %v998 = vadd.f32 %v982, 1.0
      %v999 = vadd.f32 %v984, 1.0
      %v1000 = vadd.f32 %v986, 1.0
      %v1001 = vadd.f32 %v988, 1.0
      %v1002 = vadd.f32 %v990, 1.0
      %v1003 = vrcp.pop %v991
      %v1004 = vrcp.pop %v992
      %v1005 = vrcp.pop %v993
      %v1006 = vrcp.pop %v994
      %v1007 = vrcp.pop %v995
      %v1008 = vrcp.pop %v996
      %v1009 = vrcp.pop %v997
      %v1010 = vrcp.pop %v998
      %v1011 = vrcp.pop %v999
      %v1012 = vrcp.pop %v1000
      %v1013 = vrcp.pop %v1001
      %v1014 = vrcp.pop %v1002
      %v1015 = vld [vmem:[%s3] ss:$2 sm:$0x7]
      %vm1016 = vcmp.gt.f32.partialorder %v1015, 0.5
      %s1017 = scalar_lea.vmem %s3, 1
      %v1018 = vld [vmem:[%s1017] ss:$2 sm:$0x7]
      %vm1019 = vcmp.gt.f32.partialorder %v1018, 0.5
      %1020 = vrot.lane.b32.xlu0 %v1006, 1
      %v1021 = vpop.permute.xlu0 %1020
      %1022 = vrot.lane.b32.xlu0 %v1007, 1
      %v1023 = vpop.permute.xlu0 %1022
      %1024 = vrot.lane.b32.xlu0 %v1008, 1
      %v1025 = vpop.permute.xlu0 %1024
      %vm1026 = vcmp.lt.s32.totalorder %v216, 1
      %v1027 = vsel %vm1026, %v1023, %v1025
      %v1028 = vsel %vm1026, %v1021, %v1023
      %v1029 = vsel %vm1026, %v1025, %v1021
      %1030 = vrot.lane.b32.xlu0 %v1009, 18
      %v1031 = vpop.permute.xlu0 %1030
      %1032 = vrot.lane.b32.xlu0 %v1010, 18
      %v1033 = vpop.permute.xlu0 %1032
      %1034 = vrot.lane.b32.xlu0 %v1011, 18
      %v1035 = vpop.permute.xlu0 %1034
      %vm1036 = vcmp.lt.s32.totalorder %v216, 18
      %v1037 = vsel %vm1036, %v1033, %v1035
      %v1038 = vsel %vm1036, %v1031, %v1033
      %v1039 = vsel %vm1036, %v1035, %v1031
      %1040 = vrot.lane.b32.xlu0 %v1012, 19
      %v1041 = vpop.permute.xlu0 %1040
      %1042 = vrot.lane.b32.xlu0 %v1013, 19
      %v1043 = vpop.permute.xlu0 %1042
      %1044 = vrot.lane.b32.xlu0 %v1014, 19
      %v1045 = vpop.permute.xlu0 %1044
      %vm1046 = vcmp.lt.s32.totalorder %v216, 19
      %v1047 = vsel %vm1046, %v1043, %v1045
      %v1048 = vsel %vm1046, %v1041, %v1043
      %v1049 = vsel %vm1046, %v1045, %v1041
      %v1050 = vsel %vm1019, 1, 0
      %v1051 = vlaneseq
      %v1052 = vshrl.u32 %v1051, 7
      %v1053 = vsub.s32 0, %v1052
      %v1054 = vrot.slane %v1050, %v1053
      %v1055 = vlaneseq
      %v1056 = vshrl.u32 %v1055, 7
      %v1057 = vsub.s32 1, %v1056
      %v1058 = vrot.slane %v1050, %v1057
      %v1059 = vlaneseq
      %v1060 = vshrl.u32 %v1059, 7
      %v1061 = vsub.s32 2, %v1060
      %v1062 = vrot.slane %v1050, %v1061
      %vm1063 = vcmp.eq.s32.totalorder %v1054, 1
      %vm1064 = vcmp.eq.s32.totalorder %v1058, 1
      %vm1065 = vcmp.eq.s32.totalorder %v1062, 1
      %v1066 = vsel %vm1063, %v1003, %v1029
      %v1067 = vsel %vm1064, %v1004, %v1028
      %v1068 = vsel %vm1065, %v1005, %v1027
      %v1069 = vsel %vm1063, %v1039, %v1049
      %v1070 = vsel %vm1064, %v1038, %v1048
      %v1071 = vsel %vm1065, %v1037, %v1047
      %v1072 = vsel %vm1016, 1, 0
      %v1073 = vlaneseq
      %v1074 = vshrl.u32 %v1073, 7
      %v1075 = vsub.s32 0, %v1074
      %v1076 = vrot.slane %v1072, %v1075
      %v1077 = vlaneseq
      %v1078 = vshrl.u32 %v1077, 7
      %v1079 = vsub.s32 1, %v1078
      %v1080 = vrot.slane %v1072, %v1079
      %v1081 = vlaneseq
      %v1082 = vshrl.u32 %v1081, 7
      %v1083 = vsub.s32 2, %v1082
      %v1084 = vrot.slane %v1072, %v1083
      %vm1085 = vcmp.eq.s32.totalorder %v1076, 1
      %vm1086 = vcmp.eq.s32.totalorder %v1080, 1
      %vm1087 = vcmp.eq.s32.totalorder %v1084, 1
      %v1088 = vsel %vm1085, %v1066, %v1069
      %v1089 = vsel %vm1086, %v1067, %v1070
      %v1090 = vsel %vm1087, %v1068, %v1071
      %v1091 = vpack.c.bf16 %v1088, %v1088
      %v1092 = vpack.c.bf16 %v1089, %v1089
      %v1093 = vpack.c.bf16 %v1090, %v1090
      %v1097 = vunpack.c.l.b16 %v1091
      %v1098 = vunpack.c.l.b16 %v1092
      %v1099 = vunpack.c.l.b16 %v1093
      %v1100 = vpack.c.b16 %v1098, %v1097
      %v1101 = vpack.c.b16 %v1099, %v1099
      %vm1104 = vcmask 1042432
      %vm1105 = vsmask.f32 2304
      %vm1106 = vmand %vm1104, %vm1105
      %vm1107 = vcmask 1046532
      %vm1108 = vsmask.f32 6400
      %vm1109 = vmand %vm1107, %vm1108
      %vm1110 = vmor %vm1109, %vm1106
      %v1111 = vld [vmem:[%s197] sm:$0x77]
      %v1112 = vsel %vm1110, %v1100, %v1111
      %1113 = vst [vmem:[%s197] sm:$0x77] %v1112
      %v1114 = vld [vmem:[%s197 + $0x8] sm:$0x7]
      %v1115 = vsel %vm1106, %v1101, %v1114
      %1116 = vst [vmem:[%s197 + $0x8] sm:$0x7] %v1115
      %p1117 = scmp.lt.s32.totalorder %s15, 1
      %s1118 = scalar_select %p1117, %s15, 1
      %s1119 = smul.addr %s1118, 3
      %s1120 = smul.addr %s1119, 4
      %s1121 = scalar_lea.vmem %s4, %s1120
      // Predicated region
      $region37: #{rgbtox_forward.1} parent=35 // pred_check
        %p1122 = pneg %p122
      $region38: #{rgbtox_forward.1} parent=35 // pred_check_branch
        %1124 = sbr.rel (%p1122) target = $region40
      $region39: #{rgbtox_forward.1} parent=35 // pred_region
        _
      $region40: #{rgbtox_forward.1} parent=35 // pred_fallthru
        _
    $region36: #{rgbtox_forward.1} parent=5 // pred_fallthru
      _
    %p1125 = scmp.le.s32.totalorder 2, %s10
    // Predicated region
    $region41: #{rgbtox_forward.1} parent=5 // pred_check
      %p1126 = pneg %p1125
    $region42: #{rgbtox_forward.1} parent=5 // pred_check_branch
      %1128 = sbr.rel (%p1126) target = $region44
    $region43: #{rgbtox_forward.1} parent=5 // pred_region
      %s1129 = ssub.s32 %s10, 2
      // Predicated region
      $region45: #{rgbtox_forward.1} parent=43 // pred_check
        %p1130 = pneg %p128
      $region46: #{rgbtox_forward.1} parent=43 // pred_check_branch
        %1132 = sbr.rel (%p1130) target = $region48
      $region47: #{rgbtox_forward.1} parent=43 // pred_region
        %p1133 = scmp.lt.s32.totalorder %s16, 1
        %s1134 = scalar_select %p1133, %s16, 1
        %s1135 = smul.addr %s1134, 3
        %s1136 = smul.addr %s1135, 4
        %s1137 = scalar_lea.vmem %s4, %s1136
      $region48: #{rgbtox_forward.1} parent=43 // pred_fallthru
        _
    $region44: #{rgbtox_forward.1} parent=5 // pred_fallthru
      _
  $region6: #{rgbtox_forward.1} parent=0 // loop_footer
    %s14 = sadd.s32 1, %s10
  $region7: #{rgbtox_forward.1} parent=0 // loop_footer_branch
    %9 = sbr.rel target = $region3
  $region8: #{rgbtox_forward.1} parent=0 // loop_exit
    _

</llo_original>
